<compile_context>
chip_gen: v5e
topology: v5e:2x2
jax: 0.10.0
libtpu: 0.0.40
codegen_flags: <defaults>
</compile_context>

<pallas_src>
import functools

import jax
import jax.numpy as jnp
from jax.experimental import pallas as pl
from jax.experimental.pallas import tpu as pltpu

_LANE = 128


def _scaled_tanh_kernel(x_ref, o_ref, *, alpha: float):
    # Elementwise ScaledTanh on the current VMEM tile.
    x = x_ref[...]
    y = alpha * jnp.tanh(x * (1.0 / alpha))
    o_ref[...] = y.astype(o_ref.dtype)


def _min_sublanes(dtype) -> int:
    # 8 for 32-bit, 16 for bf16/f16, 32 for int8/fp8 (sublane packing).
    bits = jnp.dtype(dtype).itemsize * 8
    return max(8, 256 // bits)


def _pick_2d_view(total: int):
    """Largest lane-dense (rows, K*128) factorization of `total`, no padding."""
    for k in (32, 16, 8, 4, 2, 1):
        wide = _LANE * k
        if total % wide == 0:
            return total // wide, wide
    return None


@functools.partial(jax.jit, static_argnums=(1,))
def scaled_tanh(x: jax.Array, alpha: float) -> jax.Array:
    """alpha * tanh(x / alpha), computed by a tiled Pallas TPU kernel."""
    orig_shape = x.shape
    dtype = x.dtype
    total = x.size

    view = _pick_2d_view(total)
    pad = 0
    if view is None:
        # Rare fallback: pad only up to the next lane multiple.  tanh(0) == 0,
        # so the padded tail is inert and is sliced off below.
        pad = (-total) % _LANE
        flat = jnp.concatenate([x.reshape(-1), jnp.zeros((pad,), dtype=dtype)])
        rows, wide = flat.size // _LANE, _LANE
        x2d = flat.reshape(rows, wide)
    else:
        rows, wide = view
        x2d = x.reshape(rows, wide)  # contiguous reshape: no HBM copy

    # ~2 MiB per block; tile_rows aligned to the dtype's minimum sublane count.
    itemsize = jnp.dtype(dtype).itemsize
    sub = _min_sublanes(dtype)
    budget_bytes = 2 << 20
    tile_rows = budget_bytes // (wide * itemsize)
    tile_rows = max(sub, (tile_rows // sub) * sub)
    if tile_rows >= rows:
        tile_rows = rows  # single block == full array (always a legal block)
    grid = (pl.cdiv(rows, tile_rows),)

    kernel = functools.partial(_scaled_tanh_kernel, alpha=float(alpha))

    out2d = pl.pallas_call(
        kernel,
        out_shape=jax.ShapeDtypeStruct((rows, wide), dtype),
        grid_spec=pltpu.PrefetchScalarGridSpec(
            num_scalar_prefetch=0,
            grid=grid,
            in_specs=[pl.BlockSpec((tile_rows, wide), lambda i: (i, 0))],
            out_specs=pl.BlockSpec((tile_rows, wide), lambda i: (i, 0)),
        ),
        compiler_params=pltpu.CompilerParams(
            dimension_semantics=("parallel",),
        ),
    )(x2d)

    out_flat = out2d.reshape(-1)
    if pad:
        out_flat = out_flat[:total]
    return out_flat.reshape(orig_shape)


if __name__ == "__main__":
    key = jax.random.PRNGKey(0)
    alpha = 1.5
    # Small NCHW input: batch=2, channels=4, spatial=16x16.
    x = jax.random.normal(key, (2, 4, 16, 16), dtype=jnp.float32)

    y = scaled_tanh(x, alpha)
    y = jax.block_until_ready(y)

    ref = alpha * jnp.tanh(x / alpha)
    assert y.shape == x.shape and y.dtype == x.dtype
    assert bool(jnp.allclose(y, ref, atol=1e-6, rtol=1e-6))

    print("KERNEL_OK")
</pallas_src>

<mosaic_0001>
module attributes {stable_mosaic.version = 11 : i64} {
  func.func @_scaled_tanh_kernel(%arg0: i32, %arg1: memref<1x2048xf32, #tpu.memory_space<vmem>>, %arg2: memref<1x2048xf32, #tpu.memory_space<vmem>>) attributes {dimension_semantics = [#tpu.dimension_semantics<parallel>], iteration_bounds = array<i64: 1>, scalar_prefetch = 0 : i64, scratch_operands = 0 : i64, tpu.core_type = #tpu.core_type<tc>, window_params = [{transform_indices = @transform_0, window_bounds = array<i64: 1, 2048>}, {transform_indices = @transform_1, window_bounds = array<i64: 1, 2048>}]} {
    %c0 = arith.constant 0 : index
    %c0_0 = arith.constant 0 : index
    %0 = vector.load %arg1[%c0, %c0_0] : memref<1x2048xf32, #tpu.memory_space<vmem>>, vector<1x2048xf32>
    %cst = arith.constant 0.666666686 : f32
    %1 = vector.broadcast %cst : f32 to vector<1x2048xf32>
    %2 = arith.mulf %0, %1 : vector<1x2048xf32>
    %3 = math.tanh %2 : vector<1x2048xf32>
    %cst_1 = arith.constant 1.500000e+00 : f32
    %4 = vector.broadcast %cst_1 : f32 to vector<1x2048xf32>
    %5 = arith.mulf %4, %3 : vector<1x2048xf32>
    %c0_2 = arith.constant 0 : index
    %c0_3 = arith.constant 0 : index
    %6 = vector.load %arg2[%c0_2, %c0_3] : memref<1x2048xf32, #tpu.memory_space<vmem>>, vector<1x2048xf32>
    tpu.vector_store %arg2[%c0_2, %c0_3], %5 {strides = array<i32>} : memref<1x2048xf32, #tpu.memory_space<vmem>>, vector<1x2048xf32>,
    return
  }
  func.func @transform_0(%arg0: i32) -> (i32, i32) {
    %c0_i32 = arith.constant 0 : i32
    %c0_i32_0 = arith.constant 0 : i32
    return %arg0, %c0_i32 : i32, i32
  }
  func.func @transform_1(%arg0: i32) -> (i32, i32) {
    %c0_i32 = arith.constant 0 : i32
    %c0_i32_0 = arith.constant 0 : i32
    return %arg0, %c0_i32 : i32, i32
  }
}

</mosaic_0001>

<llo_original>
// kernel: scaled_tanh.1
$region0: #{scaled_tanh.1}
  #allocation0 [shape = 'u32[]', space=smem, size = 0x4, offset = 0x4, fixed_abs, tag = 'smem constant byte address 0x4 - core index']
  #allocation1 [shape = 'u32[72,128]{1,0:T(1,128)}', space=vmem, size = 0x9000, scoped, tag = 'internal scratch']
  %s0 = inlined_call_operand.vmem [shape: f32[1,2048], index: 0, kind: input, shape index: {}]
  %s1 = inlined_call_operand.vmem [shape: f32[1,2048], index: 1, kind: output, shape index: {}]
  %s2 = sld [smem:[#allocation0]]
  $region14: #{scaled_tanh.1} parent=0
    _
  %s4 = ssub.s32 1, %s2
  %s5 = scalar_select 0, %s4, %s2
  // Predicated region
  $region2: #{scaled_tanh.1} parent=0 // pred_check
    _
  $region3: #{scaled_tanh.1} parent=0 // pred_check_branch
    %7 = sbr.rel (0) target = $region5
  $region4: #{scaled_tanh.1} parent=0 // pred_region
    _
  $region5: #{scaled_tanh.1} parent=0 // pred_fallthru
    _
  %v8 = vld [vmem:[%s0] sm:$0xff]
  %v9 = vld [vmem:[%s0 + $0x8] sm:$0xff]
  %v10 = vmul.f32 %v8, 0.6666667
  %v11 = vmul.f32 %v9, 0.6666667
  %v12 = vtanh.pop %v10
  %v13 = vtanh.pop %v11
  %v14 = vmul.f32 %v12, 1.5
  %v15 = vmul.f32 %v13, 1.5
  %16 = vst [vmem:[%s1] sm:$0xff] %v14
  %17 = vst [vmem:[%s1 + $0x8] sm:$0xff] %v15
  // Predicated region
  $region6: #{scaled_tanh.1} parent=0 // pred_check
    _
  $region7: #{scaled_tanh.1} parent=0 // pred_check_branch
    %19 = sbr.rel (0) target = $region9
  $region8: #{scaled_tanh.1} parent=0 // pred_region
    _
  $region9: #{scaled_tanh.1} parent=0 // pred_fallthru
    _
  // Predicated region
  $region10: #{scaled_tanh.1} parent=0 // pred_check
    _
  $region11: #{scaled_tanh.1} parent=0 // pred_check_branch
    %21 = sbr.rel (0) target = $region13
  $region12: #{scaled_tanh.1} parent=0 // pred_region
    _
  $region13: #{scaled_tanh.1} parent=0 // pred_fallthru
    _

</llo_original>
